<compile_context>
chip_gen: v5e
topology: v5e:2x2
jax: 0.10.0
libtpu: 0.0.40
codegen_flags: <defaults>
</compile_context>

<pallas_src>
import functools

import jax
import jax.numpy as jnp
from jax import lax
from jax.experimental import pallas as pl
from jax.experimental.pallas import tpu as pltpu

HIDDEN = 64


def _round_up(n, m):
    return ((n + m - 1) // m) * m


def mlp_kernel(x_ref, w1_ref, b1_ref, w2_ref, b2_ref,
               w3_ref, b3_ref, w4_ref, b4_ref, o_ref, *, chunk_b):
    # Weights/biases are tiny (<40 KiB f32) and VMEM-resident for every step.
    w1, b1 = w1_ref[...], b1_ref[...]
    w2, b2 = w2_ref[...], b2_ref[...]
    w3, b3 = w3_ref[...], b3_ref[...]
    w4, b4 = w4_ref[...], b4_ref[...]

    tile_b = x_ref.shape[0]
    n_chunks = tile_b // chunk_b

    def layer_stack(x):
        h = jnp.maximum(jnp.dot(x, w1, preferred_element_type=jnp.float32) + b1, 0.0)
        h = jnp.maximum(jnp.dot(h, w2, preferred_element_type=jnp.float32) + b2, 0.0)
        h = jnp.maximum(jnp.dot(h, w3, preferred_element_type=jnp.float32) + b3, 0.0)
        return jnp.dot(h, w4, preferred_element_type=jnp.float32) + b4

    if n_chunks == 1:
        o_ref[...] = layer_stack(x_ref[...]).astype(o_ref.dtype)
    else:
        # Carry each 256-row sub-chunk through all four layers before moving on:
        # bounds vreg live ranges and lets Mosaic interleave chunks.
        def body(c, carry):
            r0 = pl.multiple_of(c * chunk_b, chunk_b)
            xc = x_ref[pl.ds(r0, chunk_b), :]
            o_ref[pl.ds(r0, chunk_b), :] = layer_stack(xc).astype(o_ref.dtype)
            return carry

        lax.fori_loop(0, n_chunks, body, None, unroll=True)


def mlp_forward(x, params, *, tile_b=None):
    """x: [B, input_dim] float32.  params: dict of w1..w4 / b1..b4 (float32).

    Returns [B, output_dim] float32.
    """
    B, input_dim = x.shape
    hidden = params["w2"].shape[0]
    output_dim = params["w4"].shape[1]

    if tile_b is None:
        # Keep >=4 grid steps (v7x has 2 TCs; "parallel" shards steps across
        # them) while using the largest reasonable tile to amortize the
        # ~0.35 us/step overhead and saturate HBM.
        t = min(2048, max(pl.cdiv(B, 4), 8))
        tile_b = _round_up(t, 8) if t <= 512 else _round_up(t, 256)
    assert tile_b % 8 == 0
    chunk_b = tile_b if tile_b <= 512 else 256
    assert tile_b % chunk_b == 0

    grid = (pl.cdiv(B, tile_b),)  # ragged tail tile handled by Pallas OOB masking

    def fixed(i):  # weights/biases: same block every step -> never re-DMA'd
        return (0, 0)

    in_specs = [
        pl.BlockSpec((tile_b, input_dim), lambda i: (i, 0)),  # x (raw, no pad/cast)
        pl.BlockSpec((input_dim, hidden), fixed),             # w1
        pl.BlockSpec((1, hidden), fixed),                     # b1
        pl.BlockSpec((hidden, hidden), fixed),                # w2
        pl.BlockSpec((1, hidden), fixed),                     # b2
        pl.BlockSpec((hidden, hidden), fixed),                # w3
        pl.BlockSpec((1, hidden), fixed),                     # b3
        pl.BlockSpec((hidden, output_dim), fixed),            # w4
        pl.BlockSpec((1, output_dim), fixed),                 # b4
    ]
    out_spec = pl.BlockSpec((tile_b, output_dim), lambda i: (i, 0))  # narrow output

    out = pl.pallas_call(
        functools.partial(mlp_kernel, chunk_b=chunk_b),
        out_shape=jax.ShapeDtypeStruct((B, output_dim), jnp.float32),
        grid_spec=pltpu.PrefetchScalarGridSpec(
            num_scalar_prefetch=0,
            grid=grid,
            in_specs=in_specs,
            out_specs=out_spec,
        ),
        compiler_params=pltpu.CompilerParams(
            dimension_semantics=("parallel",),  # batch tiles shard across TCs on v7x
        ),
    )(x, params["w1"], params["b1"], params["w2"], params["b2"],
      params["w3"], params["b3"], params["w4"], params["b4"])

    return out


def init_params(key, input_dim, output_dim):
    """Deterministic init mimicking torch.nn.Linear (U[-1/sqrt(fan_in), +])."""
    dims = [(input_dim, HIDDEN), (HIDDEN, HIDDEN), (HIDDEN, HIDDEN),
            (HIDDEN, output_dim)]
    params = {}
    for idx, (fan_in, fan_out) in enumerate(dims, start=1):
        key, kw, kb = jax.random.split(key, 3)
        bound = 1.0 / jnp.sqrt(jnp.float32(fan_in))
        params[f"w{idx}"] = jax.random.uniform(
            kw, (fan_in, fan_out), jnp.float32, -bound, bound)
        params[f"b{idx}"] = jax.random.uniform(
            kb, (1, fan_out), jnp.float32, -bound, bound)
    return params


def mlp_ref(x, params):
    """Pure-JAX f32 reference of the original torch forward pass."""
    h = jnp.maximum(jnp.dot(x, params["w1"]) + params["b1"], 0.0)
    h = jnp.maximum(jnp.dot(h, params["w2"]) + params["b2"], 0.0)
    h = jnp.maximum(jnp.dot(h, params["w3"]) + params["b3"], 0.0)
    return jnp.dot(h, params["w4"]) + params["b4"]


if __name__ == "__main__":
    key = jax.random.PRNGKey(0)
    # batch=300 is not a multiple of the auto tile (80) -> exercises the ragged
    # tail tile and gives a 4-step "parallel" grid.
    batch, input_dim, output_dim = 300, 16, 4

    key, kx = jax.random.split(key)
    x = jax.random.normal(kx, (batch, input_dim), dtype=jnp.float32)
    params = init_params(key, input_dim, output_dim)

    out = mlp_forward(x, params)
    out = jax.block_until_ready(out)

    ref = mlp_ref(x, params)
    assert out.shape == (batch, output_dim)
    # f32 end-to-end; tolerance covers MXU multi-pass f32 matmul rounding vs XLA.
    assert jnp.allclose(out, ref, atol=2e-2, rtol=2e-2), "mismatch vs JAX ref"
    print("KERNEL_OK")
</pallas_src>

<mosaic_0001>
module attributes {stable_mosaic.version = 11 : i64} {
  func.func @mlp_kernel(%arg0: i32, %arg1: memref<80x16xf32, #tpu.memory_space<vmem>>, %arg2: memref<16x64xf32, #tpu.memory_space<vmem>>, %arg3: memref<1x64xf32, #tpu.memory_space<vmem>>, %arg4: memref<64x64xf32, #tpu.memory_space<vmem>>, %arg5: memref<1x64xf32, #tpu.memory_space<vmem>>, %arg6: memref<64x64xf32, #tpu.memory_space<vmem>>, %arg7: memref<1x64xf32, #tpu.memory_space<vmem>>, %arg8: memref<64x4xf32, #tpu.memory_space<vmem>>, %arg9: memref<1x4xf32, #tpu.memory_space<vmem>>, %arg10: memref<80x4xf32, #tpu.memory_space<vmem>>) attributes {dimension_semantics = [#tpu.dimension_semantics<parallel>], iteration_bounds = array<i64: 4>, scalar_prefetch = 0 : i64, scratch_operands = 0 : i64, tpu.core_type = #tpu.core_type<tc>, window_params = [{transform_indices = @transform_0, window_bounds = array<i64: 80, 16>}, {pipeline_mode = #tpu.pipeline_mode<synchronous>, transform_indices = @transform_1, window_bounds = array<i64: 16, 64>}, {pipeline_mode = #tpu.pipeline_mode<synchronous>, transform_indices = @transform_2, window_bounds = array<i64: 1, 64>}, {pipeline_mode = #tpu.pipeline_mode<synchronous>, transform_indices = @transform_3, window_bounds = array<i64: 64, 64>}, {pipeline_mode = #tpu.pipeline_mode<synchronous>, transform_indices = @transform_4, window_bounds = array<i64: 1, 64>}, {pipeline_mode = #tpu.pipeline_mode<synchronous>, transform_indices = @transform_5, window_bounds = array<i64: 64, 64>}, {pipeline_mode = #tpu.pipeline_mode<synchronous>, transform_indices = @transform_6, window_bounds = array<i64: 1, 64>}, {pipeline_mode = #tpu.pipeline_mode<synchronous>, transform_indices = @transform_7, window_bounds = array<i64: 64, 4>}, {pipeline_mode = #tpu.pipeline_mode<synchronous>, transform_indices = @transform_8, window_bounds = array<i64: 1, 4>}, {transform_indices = @transform_9, window_bounds = array<i64: 80, 4>}]} {
    %c0 = arith.constant 0 : index
    %c0_0 = arith.constant 0 : index
    %0 = vector.load %arg2[%c0, %c0_0] : memref<16x64xf32, #tpu.memory_space<vmem>>, vector<16x64xf32>
    %c0_1 = arith.constant 0 : index
    %c0_2 = arith.constant 0 : index
    %1 = vector.load %arg3[%c0_1, %c0_2] : memref<1x64xf32, #tpu.memory_space<vmem>>, vector<1x64xf32>
    %c0_3 = arith.constant 0 : index
    %c0_4 = arith.constant 0 : index
    %2 = vector.load %arg4[%c0_3, %c0_4] : memref<64x64xf32, #tpu.memory_space<vmem>>, vector<64x64xf32>
    %c0_5 = arith.constant 0 : index
    %c0_6 = arith.constant 0 : index
    %3 = vector.load %arg5[%c0_5, %c0_6] : memref<1x64xf32, #tpu.memory_space<vmem>>, vector<1x64xf32>
    %c0_7 = arith.constant 0 : index
    %c0_8 = arith.constant 0 : index
    %4 = vector.load %arg6[%c0_7, %c0_8] : memref<64x64xf32, #tpu.memory_space<vmem>>, vector<64x64xf32>
    %c0_9 = arith.constant 0 : index
    %c0_10 = arith.constant 0 : index
    %5 = vector.load %arg7[%c0_9, %c0_10] : memref<1x64xf32, #tpu.memory_space<vmem>>, vector<1x64xf32>
    %c0_11 = arith.constant 0 : index
    %c0_12 = arith.constant 0 : index
    %6 = vector.load %arg8[%c0_11, %c0_12] : memref<64x4xf32, #tpu.memory_space<vmem>>, vector<64x4xf32>
    %c0_13 = arith.constant 0 : index
    %c0_14 = arith.constant 0 : index
    %7 = vector.load %arg9[%c0_13, %c0_14] : memref<1x4xf32, #tpu.memory_space<vmem>>, vector<1x4xf32>
    %c0_15 = arith.constant 0 : index
    %c0_16 = arith.constant 0 : index
    %8 = vector.load %arg1[%c0_15, %c0_16] : memref<80x16xf32, #tpu.memory_space<vmem>>, vector<80x16xf32>
    %cst = arith.constant dense<0.000000e+00> : vector<80x64xf32>
    %9 = tpu.matmul %8, %0, %cst {dimension_numbers = #tpu.dot_dimension_numbers<[1], [0], [0], [1], [0, 0, 1, 1], [], []>} : vector<80x16xf32>, vector<16x64xf32>, vector<80x64xf32> -> vector<80x64xf32>
    %10 = vector.broadcast %1 : vector<1x64xf32> to vector<80x64xf32>
    %11 = arith.addf %9, %10 : vector<80x64xf32>
    %cst_17 = arith.constant 0.000000e+00 : f32
    %12 = vector.broadcast %cst_17 : f32 to vector<80x64xf32>
    %13 = arith.maximumf %11, %12 : vector<80x64xf32>
    %cst_18 = arith.constant dense<0.000000e+00> : vector<80x64xf32>
    %14 = tpu.matmul %13, %2, %cst_18 {dimension_numbers = #tpu.dot_dimension_numbers<[1], [0], [0], [1], [0, 0, 1, 1], [], []>} : vector<80x64xf32>, vector<64x64xf32>, vector<80x64xf32> -> vector<80x64xf32>
    %15 = vector.broadcast %3 : vector<1x64xf32> to vector<80x64xf32>
    %16 = arith.addf %14, %15 : vector<80x64xf32>
    %cst_19 = arith.constant 0.000000e+00 : f32
    %17 = vector.broadcast %cst_19 : f32 to vector<80x64xf32>
    %18 = arith.maximumf %16, %17 : vector<80x64xf32>
    %cst_20 = arith.constant dense<0.000000e+00> : vector<80x64xf32>
    %19 = tpu.matmul %18, %4, %cst_20 {dimension_numbers = #tpu.dot_dimension_numbers<[1], [0], [0], [1], [0, 0, 1, 1], [], []>} : vector<80x64xf32>, vector<64x64xf32>, vector<80x64xf32> -> vector<80x64xf32>
    %20 = vector.broadcast %5 : vector<1x64xf32> to vector<80x64xf32>
    %21 = arith.addf %19, %20 : vector<80x64xf32>
    %cst_21 = arith.constant 0.000000e+00 : f32
    %22 = vector.broadcast %cst_21 : f32 to vector<80x64xf32>
    %23 = arith.maximumf %21, %22 : vector<80x64xf32>
    %cst_22 = arith.constant dense<0.000000e+00> : vector<80x4xf32>
    %24 = tpu.matmul %23, %6, %cst_22 {dimension_numbers = #tpu.dot_dimension_numbers<[1], [0], [0], [1], [0, 0, 1, 1], [], []>} : vector<80x64xf32>, vector<64x4xf32>, vector<80x4xf32> -> vector<80x4xf32>
    %25 = vector.broadcast %7 : vector<1x4xf32> to vector<80x4xf32>
    %26 = arith.addf %24, %25 : vector<80x4xf32>
    %c0_23 = arith.constant 0 : index
    %c0_24 = arith.constant 0 : index
    %27 = vector.load %arg10[%c0_23, %c0_24] : memref<80x4xf32, #tpu.memory_space<vmem>>, vector<80x4xf32>
    tpu.vector_store %arg10[%c0_23, %c0_24], %26 {strides = array<i32>} : memref<80x4xf32, #tpu.memory_space<vmem>>, vector<80x4xf32>,
    return
  }
  func.func @transform_0(%arg0: i32) -> (i32, i32) {
    %c0_i32 = arith.constant 0 : i32
    %c0_i32_0 = arith.constant 0 : i32
    return %arg0, %c0_i32 : i32, i32
  }
  func.func @transform_1(%arg0: i32) -> (i32, i32) {
    %c0_i32 = arith.constant 0 : i32
    %c0_i32_0 = arith.constant 0 : i32
    %c0_i32_1 = arith.constant 0 : i32
    return %c0_i32, %c0_i32_0 : i32, i32
  }
  func.func @transform_2(%arg0: i32) -> (i32, i32) {
    %c0_i32 = arith.constant 0 : i32
    %c0_i32_0 = arith.constant 0 : i32
    %c0_i32_1 = arith.constant 0 : i32
    return %c0_i32, %c0_i32_0 : i32, i32
  }
  func.func @transform_3(%arg0: i32) -> (i32, i32) {
    %c0_i32 = arith.constant 0 : i32
    %c0_i32_0 = arith.constant 0 : i32
    %c0_i32_1 = arith.constant 0 : i32
    return %c0_i32, %c0_i32_0 : i32, i32
  }
  func.func @transform_4(%arg0: i32) -> (i32, i32) {
    %c0_i32 = arith.constant 0 : i32
    %c0_i32_0 = arith.constant 0 : i32
    %c0_i32_1 = arith.constant 0 : i32
    return %c0_i32, %c0_i32_0 : i32, i32
  }
  func.func @transform_5(%arg0: i32) -> (i32, i32) {
    %c0_i32 = arith.constant 0 : i32
    %c0_i32_0 = arith.constant 0 : i32
    %c0_i32_1 = arith.constant 0 : i32
    return %c0_i32, %c0_i32_0 : i32, i32
  }
  func.func @transform_6(%arg0: i32) -> (i32, i32) {
    %c0_i32 = arith.constant 0 : i32
    %c0_i32_0 = arith.constant 0 : i32
    %c0_i32_1 = arith.constant 0 : i32
    return %c0_i32, %c0_i32_0 : i32, i32
  }
  func.func @transform_7(%arg0: i32) -> (i32, i32) {
    %c0_i32 = arith.constant 0 : i32
    %c0_i32_0 = arith.constant 0 : i32
    %c0_i32_1 = arith.constant 0 : i32
    return %c0_i32, %c0_i32_0 : i32, i32
  }
  func.func @transform_8(%arg0: i32) -> (i32, i32) {
    %c0_i32 = arith.constant 0 : i32
    %c0_i32_0 = arith.constant 0 : i32
    %c0_i32_1 = arith.constant 0 : i32
    return %c0_i32, %c0_i32_0 : i32, i32
  }
  func.func @transform_9(%arg0: i32) -> (i32, i32) {
    %c0_i32 = arith.constant 0 : i32
    %c0_i32_0 = arith.constant 0 : i32
    return %arg0, %c0_i32 : i32, i32
  }
}

</mosaic_0001>

<llo_original>
// kernel: tpu_custom_call.1
$region0: #{tpu_custom_call.1}
  #allocation0 [shape = 'u32[]', space=smem, size = 0x4, offset = 0x4, fixed_abs, tag = 'smem constant byte address 0x4 - core index']
  #allocation1 [shape = 'u32[72,128]{1,0:T(1,128)}', space=vmem, size = 0x9000, scoped, tag = 'internal scratch']
  %s0 = inlined_call_operand.vmem [shape: f32[300,16], index: 0, kind: input, shape index: {}]
  %s1 = inlined_call_operand.vmem [shape: f32[16,64], index: 1, kind: input, shape index: {}]
  %s2 = inlined_call_operand.vmem [shape: f32[1,64], index: 2, kind: input, shape index: {}]
  %s3 = inlined_call_operand.vmem [shape: f32[64,64], index: 3, kind: input, shape index: {}]
  %s4 = inlined_call_operand.vmem [shape: f32[1,64], index: 4, kind: input, shape index: {}]
  %s5 = inlined_call_operand.vmem [shape: f32[64,64], index: 5, kind: input, shape index: {}]
  %s6 = inlined_call_operand.vmem [shape: f32[1,64], index: 6, kind: input, shape index: {}]
  %s7 = inlined_call_operand.vmem [shape: f32[64,4], index: 7, kind: input, shape index: {}]
  %s8 = inlined_call_operand.vmem [shape: f32[1,4], index: 8, kind: input, shape index: {}]
  %s9 = inlined_call_operand.vmem [shape: f32[300,4], index: 9, kind: output, shape index: {}]
  %s10 = sld [smem:[#allocation0]]
  $region117: #{tpu_custom_call.1} parent=0
    _
  %s12 = ssub.s32 1, %s10
  %s13 = scalar_select 0, %s12, %s10
  $region1: #{tpu_custom_call.1} parent=0
    #allocation2 [shape = 'u8[81920]{0}', space=vmem, size = 0x14000, scoped, tag = 'output window, operand 0']
    loop: start=0, step=1, limit=6
    $region2: #{tpu_custom_call.1} parent=1 // loop_pre_header
      _
    $region3: #{tpu_custom_call.1} parent=1 // loop_header
      %s15 = sphi 0, %s19
      %p16 = scmp.ge.s32.totalorder %s15, 6
      %s25 = sphi 0, %s27
      %s28 = sphi 0, %s25
      %s29 = sphi 0, %s28
      %s45 = sphi 0, %s29
      %s49 = sphi 0, %s49
      %s51 = sphi 0, %s49
      %s52 = sphi 0, %s51
      %s66 = sphi 0, %s52
      %s70 = sphi 0, %s70
      %s72 = sphi 0, %s70
      %s73 = sphi 0, %s72
      %s87 = sphi 0, %s73
      %s91 = sphi 0, %s91
      %s93 = sphi 0, %s91
      %s94 = sphi 0, %s93
      %s108 = sphi 0, %s94
      %s112 = sphi 0, %s112
      %s114 = sphi 0, %s112
      %s115 = sphi 0, %s114
      %s129 = sphi 0, %s115
      %s133 = sphi 0, %s133
      %s135 = sphi 0, %s133
      %s136 = sphi 0, %s135
      %s150 = sphi 0, %s136
      %s154 = sphi 0, %s154
      %s156 = sphi 0, %s154
      %s157 = sphi 0, %s156
      %s171 = sphi 0, %s157
      %s175 = sphi 0, %s175
      %s177 = sphi 0, %s175
      %s178 = sphi 0, %s177
      %s192 = sphi 0, %s178
      %s196 = sphi 0, %s196
      %s198 = sphi 0, %s196
      %s199 = sphi 0, %s198
      %s213 = sphi 0, %s199
      %s219 = sphi 0, %s221
      %s222 = sphi 0, %s219
      %s223 = sphi 0, %s222
      %s239 = sphi 0, %s223
    $region4: #{tpu_custom_call.1} parent=1 // loop_header_branch
      %18 = sbr.rel (%p16) target = $region8
    $region5: #{tpu_custom_call.1} parent=1 // loop_body
      %s20 = ssub.s32 %s15, 1
      %s21 = ssub.s32 %s15, 2
      %s22 = sadd.s32 %s15, 1
      %s23 = ssub.s32 %s15, %s22
      %p24 = scmp.eq.s32.totalorder %s23, 0
      %s26 = sadd.s32 %s25, 1
      %s27 = scalar_select %p24, %s25, %s26
      %p30 = pneg %p24
      %p31 = scmp.eq.s32.totalorder %s15, 3
      %p32 = por %p30, %p31
      %p33 = scmp.ne.s32.totalorder %s25, %s28
      %p34 = scmp.eq.s32.totalorder %s15, 0
      %p35 = por %p33, %p34
      %p36 = scmp.ne.s32.totalorder %s25, %s28
      %p37 = scmp.eq.s32.totalorder %s20, 3
      %p38 = por %p36, %p37
      %p39 = scmp.ne.s32.totalorder %s28, %s29
      %p40 = scmp.eq.s32.totalorder %s20, 0
      %p41 = por %p39, %p40
      %p42 = scmp.ne.s32.totalorder %s28, %s29
      %p43 = scmp.eq.s32.totalorder %s21, 3
      %p44 = por %p42, %p43
      %p46 = scmp.ne.s32.totalorder %s29, %s45
      %p47 = scmp.eq.s32.totalorder %s21, 0
      %p48 = por %p46, %p47
      %s50 = sadd.s32 %s49, 1
      %p53 = scmp.eq.s32.totalorder %s15, 3
      %p54 = scmp.ne.s32.totalorder %s49, %s51
      %p55 = scmp.eq.s32.totalorder %s15, 0
      %p56 = por %p54, %p55
      %p57 = scmp.ne.s32.totalorder %s49, %s51
      %p58 = scmp.eq.s32.totalorder %s20, 3
      %p59 = por %p57, %p58
      %p60 = scmp.ne.s32.totalorder %s51, %s52
      %p61 = scmp.eq.s32.totalorder %s20, 0
      %p62 = por %p60, %p61
      %p63 = scmp.ne.s32.totalorder %s51, %s52
      %p64 = scmp.eq.s32.totalorder %s21, 3
      %p65 = por %p63, %p64
      %p67 = scmp.ne.s32.totalorder %s52, %s66
      %p68 = scmp.eq.s32.totalorder %s21, 0
      %p69 = por %p67, %p68
      %s71 = sadd.s32 %s70, 1
      %p74 = scmp.eq.s32.totalorder %s15, 3
      %p75 = scmp.ne.s32.totalorder %s70, %s72
      %p76 = scmp.eq.s32.totalorder %s15, 0
      %p77 = por %p75, %p76
      %p78 = scmp.ne.s32.totalorder %s70, %s72
      %p79 = scmp.eq.s32.totalorder %s20, 3
      %p80 = por %p78, %p79
      %p81 = scmp.ne.s32.totalorder %s72, %s73
      %p82 = scmp.eq.s32.totalorder %s20, 0
      %p83 = por %p81, %p82
      %p84 = scmp.ne.s32.totalorder %s72, %s73
      %p85 = scmp.eq.s32.totalorder %s21, 3
      %p86 = por %p84, %p85
      %p88 = scmp.ne.s32.totalorder %s73, %s87
      %p89 = scmp.eq.s32.totalorder %s21, 0
      %p90 = por %p88, %p89
      %s92 = sadd.s32 %s91, 1
      %p95 = scmp.eq.s32.totalorder %s15, 3
      %p96 = scmp.ne.s32.totalorder %s91, %s93
      %p97 = scmp.eq.s32.totalorder %s15, 0
      %p98 = por %p96, %p97
      %p99 = scmp.ne.s32.totalorder %s91, %s93
      %p100 = scmp.eq.s32.totalorder %s20, 3
      %p101 = por %p99, %p100
      %p102 = scmp.ne.s32.totalorder %s93, %s94
      %p103 = scmp.eq.s32.totalorder %s20, 0
      %p104 = por %p102, %p103
      %p105 = scmp.ne.s32.totalorder %s93, %s94
      %p106 = scmp.eq.s32.totalorder %s21, 3
      %p107 = por %p105, %p106
      %p109 = scmp.ne.s32.totalorder %s94, %s108
      %p110 = scmp.eq.s32.totalorder %s21, 0
      %p111 = por %p109, %p110
      %s113 = sadd.s32 %s112, 1
      %p116 = scmp.eq.s32.totalorder %s15, 3
      %p117 = scmp.ne.s32.totalorder %s112, %s114
      %p118 = scmp.eq.s32.totalorder %s15, 0
      %p119 = por %p117, %p118
      %p120 = scmp.ne.s32.totalorder %s112, %s114
      %p121 = scmp.eq.s32.totalorder %s20, 3
      %p122 = por %p120, %p121
      %p123 = scmp.ne.s32.totalorder %s114, %s115
      %p124 = scmp.eq.s32.totalorder %s20, 0
      %p125 = por %p123, %p124
      %p126 = scmp.ne.s32.totalorder %s114, %s115
      %p127 = scmp.eq.s32.totalorder %s21, 3
      %p128 = por %p126, %p127
      %p130 = scmp.ne.s32.totalorder %s115, %s129
      %p131 = scmp.eq.s32.totalorder %s21, 0
      %p132 = por %p130, %p131
      %s134 = sadd.s32 %s133, 1
      %p137 = scmp.eq.s32.totalorder %s15, 3
      %p138 = scmp.ne.s32.totalorder %s133, %s135
      %p139 = scmp.eq.s32.totalorder %s15, 0
      %p140 = por %p138, %p139
      %p141 = scmp.ne.s32.totalorder %s133, %s135
      %p142 = scmp.eq.s32.totalorder %s20, 3
      %p143 = por %p141, %p142
      %p144 = scmp.ne.s32.totalorder %s135, %s136
      %p145 = scmp.eq.s32.totalorder %s20, 0
      %p146 = por %p144, %p145
      %p147 = scmp.ne.s32.totalorder %s135, %s136
      %p148 = scmp.eq.s32.totalorder %s21, 3
      %p149 = por %p147, %p148
      %p151 = scmp.ne.s32.totalorder %s136, %s150
      %p152 = scmp.eq.s32.totalorder %s21, 0
      %p153 = por %p151, %p152
      %s155 = sadd.s32 %s154, 1
      %p158 = scmp.eq.s32.totalorder %s15, 3
      %p159 = scmp.ne.s32.totalorder %s154, %s156
      %p160 = scmp.eq.s32.totalorder %s15, 0
      %p161 = por %p159, %p160
      %p162 = scmp.ne.s32.totalorder %s154, %s156
      %p163 = scmp.eq.s32.totalorder %s20, 3
      %p164 = por %p162, %p163
      %p165 = scmp.ne.s32.totalorder %s156, %s157
      %p166 = scmp.eq.s32.totalorder %s20, 0
      %p167 = por %p165, %p166
      %p168 = scmp.ne.s32.totalorder %s156, %s157
      %p169 = scmp.eq.s32.totalorder %s21, 3
      %p170 = por %p168, %p169
      %p172 = scmp.ne.s32.totalorder %s157, %s171
      %p173 = scmp.eq.s32.totalorder %s21, 0
      %p174 = por %p172, %p173
      %s176 = sadd.s32 %s175, 1
      %p179 = scmp.eq.s32.totalorder %s15, 3
      %p180 = scmp.ne.s32.totalorder %s175, %s177
      %p181 = scmp.eq.s32.totalorder %s15, 0
      %p182 = por %p180, %p181
      %p183 = scmp.ne.s32.totalorder %s175, %s177
      %p184 = scmp.eq.s32.totalorder %s20, 3
      %p185 = por %p183, %p184
      %p186 = scmp.ne.s32.totalorder %s177, %s178
      %p187 = scmp.eq.s32.totalorder %s20, 0
      %p188 = por %p186, %p187
      %p189 = scmp.ne.s32.totalorder %s177, %s178
      %p190 = scmp.eq.s32.totalorder %s21, 3
      %p191 = por %p189, %p190
      %p193 = scmp.ne.s32.totalorder %s178, %s192
      %p194 = scmp.eq.s32.totalorder %s21, 0
      %p195 = por %p193, %p194
      %s197 = sadd.s32 %s196, 1
      %p200 = scmp.eq.s32.totalorder %s15, 3
      %p201 = scmp.ne.s32.totalorder %s196, %s198
      %p202 = scmp.eq.s32.totalorder %s15, 0
      %p203 = por %p201, %p202
      %p204 = scmp.ne.s32.totalorder %s196, %s198
      %p205 = scmp.eq.s32.totalorder %s20, 3
      %p206 = por %p204, %p205
      %p207 = scmp.ne.s32.totalorder %s198, %s199
      %p208 = scmp.eq.s32.totalorder %s20, 0
      %p209 = por %p207, %p208
      %p210 = scmp.ne.s32.totalorder %s198, %s199
      %p211 = scmp.eq.s32.totalorder %s21, 3
      %p212 = por %p210, %p211
      %p214 = scmp.ne.s32.totalorder %s199, %s213
      %p215 = scmp.eq.s32.totalorder %s21, 0
      %p216 = por %p214, %p215
      %s217 = ssub.s32 %s15, %s22
      %p218 = scmp.eq.s32.totalorder %s217, 0
      %s220 = sadd.s32 %s219, 1
      %s221 = scalar_select %p218, %s219, %s220
      %p224 = pneg %p218
      %p225 = scmp.eq.s32.totalorder %s15, 3
      %p226 = por %p224, %p225
      %p227 = scmp.ne.s32.totalorder %s219, %s222
      %p228 = scmp.eq.s32.totalorder %s15, 0
      %p229 = por %p227, %p228
      %p230 = scmp.ne.s32.totalorder %s219, %s222
      %p231 = scmp.eq.s32.totalorder %s20, 3
      %p232 = por %p230, %p231
      %p233 = scmp.ne.s32.totalorder %s222, %s223
      %p234 = scmp.eq.s32.totalorder %s20, 0
      %p235 = por %p233, %p234
      %p236 = scmp.ne.s32.totalorder %s222, %s223
      %p237 = scmp.eq.s32.totalorder %s21, 3
      %p238 = por %p236, %p237
      %p240 = scmp.ne.s32.totalorder %s223, %s239
      %p241 = scmp.eq.s32.totalorder %s21, 0
      %p242 = por %p240, %p241
      %p243 = scmp.le.s32.totalorder 1, %s15
      %p244 = scmp.lt.s32.totalorder %s15, 5
      %p245 = pnand %p243, %p244
      %p246 = pneg %p245
      // Predicated region
      $region9: #{tpu_custom_call.1} parent=5 // pred_check
        _
      $region10: #{tpu_custom_call.1} parent=5 // pred_check_branch
        %248 = sbr.rel (%p245) target = $region12
      $region11: #{tpu_custom_call.1} parent=5 // pred_region
        %s249 = ssub.s32 %s15, 1
        // Predicated region
        $region13: #{tpu_custom_call.1} parent=11 // pred_check
          %p250 = pneg %p62
        $region14: #{tpu_custom_call.1} parent=11 // pred_check_branch
          %252 = sbr.rel (%p250) target = $region16
        $region15: #{tpu_custom_call.1} parent=11 // pred_region
          _
        $region16: #{tpu_custom_call.1} parent=11 // pred_fallthru
          _
        // Predicated region
        $region17: #{tpu_custom_call.1} parent=11 // pred_check
          %p253 = pneg %p83
        $region18: #{tpu_custom_call.1} parent=11 // pred_check_branch
          %255 = sbr.rel (%p253) target = $region20
        $region19: #{tpu_custom_call.1} parent=11 // pred_region
          _
        $region20: #{tpu_custom_call.1} parent=11 // pred_fallthru
          _
        // Predicated region
        $region21: #{tpu_custom_call.1} parent=11 // pred_check
          %p256 = pneg %p104
        $region22: #{tpu_custom_call.1} parent=11 // pred_check_branch
          %258 = sbr.rel (%p256) target = $region24
        $region23: #{tpu_custom_call.1} parent=11 // pred_region
          _
        $region24: #{tpu_custom_call.1} parent=11 // pred_fallthru
          _
        // Predicated region
        $region25: #{tpu_custom_call.1} parent=11 // pred_check
          %p259 = pneg %p125
        $region26: #{tpu_custom_call.1} parent=11 // pred_check_branch
          %261 = sbr.rel (%p259) target = $region28
        $region27: #{tpu_custom_call.1} parent=11 // pred_region
          _
        $region28: #{tpu_custom_call.1} parent=11 // pred_fallthru
          _
        // Predicated region
        $region29: #{tpu_custom_call.1} parent=11 // pred_check
          %p262 = pneg %p146
        $region30: #{tpu_custom_call.1} parent=11 // pred_check_branch
          %264 = sbr.rel (%p262) target = $region32
        $region31: #{tpu_custom_call.1} parent=11 // pred_region
          _
        $region32: #{tpu_custom_call.1} parent=11 // pred_fallthru
          _
        // Predicated region
        $region33: #{tpu_custom_call.1} parent=11 // pred_check
          %p265 = pneg %p167
        $region34: #{tpu_custom_call.1} parent=11 // pred_check_branch
          %267 = sbr.rel (%p265) target = $region36
        $region35: #{tpu_custom_call.1} parent=11 // pred_region
          _
        $region36: #{tpu_custom_call.1} parent=11 // pred_fallthru
          _
        // Predicated region
        $region37: #{tpu_custom_call.1} parent=11 // pred_check
          %p268 = pneg %p188
        $region38: #{tpu_custom_call.1} parent=11 // pred_check_branch
          %270 = sbr.rel (%p268) target = $region40
        $region39: #{tpu_custom_call.1} parent=11 // pred_region
          _
        $region40: #{tpu_custom_call.1} parent=11 // pred_fallthru
          _
        // Predicated region
        $region41: #{tpu_custom_call.1} parent=11 // pred_check
          %p271 = pneg %p209
        $region42: #{tpu_custom_call.1} parent=11 // pred_check_branch
          %273 = sbr.rel (%p271) target = $region44
        $region43: #{tpu_custom_call.1} parent=11 // pred_region
          _
        $region44: #{tpu_custom_call.1} parent=11 // pred_fallthru
          _
      $region12: #{tpu_custom_call.1} parent=5 // pred_fallthru
        _
      %p274 = scmp.lt.s32.totalorder %s15, 4
      // Predicated region
      $region45: #{tpu_custom_call.1} parent=5 // pred_check
        %p275 = pneg %p274
      $region46: #{tpu_custom_call.1} parent=5 // pred_check_branch
        %277 = sbr.rel (%p275) target = $region48
      $region47: #{tpu_custom_call.1} parent=5 // pred_region
        // Predicated region
        $region49: #{tpu_custom_call.1} parent=47 // pred_check
          %p278 = pneg %p35
        $region50: #{tpu_custom_call.1} parent=47 // pred_check_branch
          %280 = sbr.rel (%p278) target = $region52
        $region51: #{tpu_custom_call.1} parent=47 // pred_region
          %s281 = smul.u32 10, %s15
          %s282 = ssub.s32 38, %s281
          %p283 = scmp.lt.s32.totalorder %s282, 10
          %s284 = scalar_select %p283, %s282, 10
          %s285 = smul.u32 8, %s284
          %p286 = scmp.lt.s32.totalorder %s281, 37
          %s287 = scalar_select %p286, %s281, 37
          %s288 = smul.addr %s287, 8
          %s289 = scalar_lea.vmem %s0, %s288
          %s290 = smul.u32 10, %s15
          %s291 = ssub.s32 38, %s290
          %p292 = scmp.lt.s32.totalorder %s291, 10
          %s293 = scalar_select %p292, %s291, 10
          %s294 = smul.u32 8, %s293
        $region52: #{tpu_custom_call.1} parent=47 // pred_fallthru
          _
      $region48: #{tpu_custom_call.1} parent=5 // pred_fallthru
        _
      %p295 = scmp.le.s32.totalorder 1, %s15
      %p296 = scmp.lt.s32.totalorder %s15, 5
      %p297 = pnand %p295, %p296
      %p298 = pneg %p297
      // Predicated region
      $region53: #{tpu_custom_call.1} parent=5 // pred_check
        _
      $region54: #{tpu_custom_call.1} parent=5 // pred_check_branch
        %300 = sbr.rel (%p297) target = $region56
      $region55: #{tpu_custom_call.1} parent=5 // pred_region
        %s301 = ssub.s32 %s15, 1
        %s302 = smul.u32 10, %s20
        %s303 = ssub.s32 38, %s302
        %p304 = scmp.lt.s32.totalorder %s303, 10
        %s305 = scalar_select %p304, %s303, 10
        %s306 = smul.u32 8, %s305
        %p307 = scmp.lt.s32.totalorder %s302, 37
        %s308 = scalar_select %p307, %s302, 37
        %s309 = smul.addr %s308, 8
        %s310 = scalar_lea.vmem %s0, %s309
        %p311 = pneg %p41
        %p312 = pneg %p38
        %p313 = pneg %p62
        %p314 = pneg %p59
        %p315 = pneg %p83
        %p316 = pneg %p80
        %p317 = pneg %p104
        %p318 = pneg %p101
        %p319 = pneg %p125
        %p320 = pneg %p122
        %p321 = pneg %p146
        %p322 = pneg %p143
        %p323 = pneg %p167
        %p324 = pneg %p164
        %p325 = pneg %p188
        %p326 = pneg %p185
        %p327 = pneg %p209
        %p328 = pneg %p206
        %p329 = pneg %p235
        %p330 = pneg %p232
        %s331 = sand.u32 %s222, 1
        %s332 = sand.u32 %s222, 1
        %s333 = smul.addr %s332, 80
        %s334 = scalar_lea.vmem [#allocation2], %s333
        %s335 = smul.u32 10, %s20
        %s336 = ssub.s32 38, %s335
        %p337 = scmp.lt.s32.totalorder %s336, 10
        %s338 = scalar_select %p337, %s336, 10
        %s339 = smul.u32 8, %s338
        %p340 = scmp.lt.s32.totalorder %s335, 37
        %s341 = scalar_select %p340, %s335, 37
        %s342 = smul.addr %s341, 8
        %s343 = scalar_lea.vmem %s0, %s342
        %s344 = smul.u32 10, %s20
        %s345 = ssub.s32 38, %s344
        %p346 = scmp.lt.s32.totalorder %s345, 10
        %s347 = scalar_select %p346, %s345, 10
        %s348 = smul.u32 8, %s347
        %s349 = smul.u32 10, %s20
        %s350 = ssub.s32 38, %s349
        %p351 = scmp.lt.s32.totalorder %s350, 10
        %s352 = scalar_select %p351, %s350, 10
        %s353 = smul.u32 8, %s352
        %v354 = vld [vmem:[%s1] sm:$0xff]
        %v355 = vld [vmem:[%s1 + $0x8] sm:$0xff]
        %v356 = vld [vmem:[%s2] sm:$0x1]
        %v357 = vld [vmem:[%s3] sm:$0xff]
        %v358 = vld [vmem:[%s3 + $0x8] sm:$0xff]
        %v359 = vld [vmem:[%s3 + $0x10] sm:$0xff]
        %v360 = vld [vmem:[%s3 + $0x18] sm:$0xff]
        %v361 = vld [vmem:[%s3 + $0x20] sm:$0xff]
        %v362 = vld [vmem:[%s3 + $0x28] sm:$0xff]
        %v363 = vld [vmem:[%s3 + $0x30] sm:$0xff]
        %v364 = vld [vmem:[%s3 + $0x38] sm:$0xff]
        %v365 = vld [vmem:[%s4] sm:$0x1]
        %v366 = vld [vmem:[%s5] sm:$0xff]
        %v367 = vld [vmem:[%s5 + $0x8] sm:$0xff]
        %v368 = vld [vmem:[%s5 + $0x10] sm:$0xff]
        %v369 = vld [vmem:[%s5 + $0x18] sm:$0xff]
        %v370 = vld [vmem:[%s5 + $0x20] sm:$0xff]
        %v371 = vld [vmem:[%s5 + $0x28] sm:$0xff]
        %v372 = vld [vmem:[%s5 + $0x30] sm:$0xff]
        %v373 = vld [vmem:[%s5 + $0x38] sm:$0xff]
        %v374 = vld [vmem:[%s6] sm:$0x1]
        %v375 = vld [vmem:[%s7] sm:$0xff]
        %v376 = vld [vmem:[%s7 + $0x8] sm:$0xff]
        %v377 = vld [vmem:[%s7 + $0x10] sm:$0xff]
        %v378 = vld [vmem:[%s7 + $0x18] sm:$0xff]
        %v379 = vld [vmem:[%s7 + $0x20] sm:$0xff]
        %v380 = vld [vmem:[%s7 + $0x28] sm:$0xff]
        %v381 = vld [vmem:[%s7 + $0x30] sm:$0xff]
        %v382 = vld [vmem:[%s7 + $0x38] sm:$0xff]
        %v383 = vld [vmem:[%s8] sm:$0x1]
        %v384 = vld [vmem:[%s343] sm:$0xff]
        %v385 = vld [vmem:[%s343 + $0x8] sm:$0xff]
        %v386 = vld [vmem:[%s343 + $0x10] sm:$0xff]
        %v387 = vld [vmem:[%s343 + $0x18] sm:$0xff]
        %v388 = vld [vmem:[%s343 + $0x20] sm:$0xff]
        %v389 = vld [vmem:[%s343 + $0x28] sm:$0xff]
        %v390 = vld [vmem:[%s343 + $0x30] sm:$0xff]
        %v391 = vld [vmem:[%s343 + $0x38] sm:$0xff]
        %v392 = vld [vmem:[%s343 + $0x40] sm:$0xff]
        %v393 = vld [vmem:[%s343 + $0x48] sm:$0xff]
        %v395 = vperm.slane %v356, 0
        %vm397 = vcmask 130048
        %v399 = vsel %vm397, %v384, 0
        %v402 = vsel %vm397, %v385, 0
        %v405 = vsel %vm397, %v386, 0
        %v408 = vsel %vm397, %v387, 0
        %v411 = vsel %vm397, %v388, 0
        %v414 = vsel %vm397, %v389, 0
        %v417 = vsel %vm397, %v390, 0
        %v420 = vsel %vm397, %v391, 0
        %v423 = vsel %vm397, %v392, 0
        %v426 = vsel %vm397, %v393, 0
        %428 = vmatpush.msra.mxu0 0.0
        %429 = vmatpush.msra.mxu0 0.0
        %430 = vmatpush.msra.mxu0 0.0
        %431 = vmatpush.msra.mxu0 0.0
        %432 = vmatpush.msra.mxu0 0.0
        %433 = vmatpush.msra.mxu0 0.0
        %434 = vmatpush.msra.mxu0 0.0
        %435 = vmatpush.msra.mxu0 0.0
        %436 = vmatpush.msra.mxu0 0.0
        %437 = vmatpush.msra.mxu0 0.0
        %438 = vmatpush.msra.mxu0 0.0
        %439 = vmatpush.msra.mxu0 0.0
        %440 = vmatpush.msra.mxu0 0.0
        %441 = vmatpush.msra.mxu0 0.0
        %442 = vmatpush.msra.mxu0 %v355
        %443 = vmatpush.msra.mxu0 %v354
        %444 = vmatmul.f32.gmra.mxu0 %v399
        %v445 = vpop.f32.mrf.mxu0
        %v446 = vadd.f32 %v395, %v445
        %447 = vmatmul.f32.gmra.mxu0 %v402
        %v448 = vpop.f32.mrf.mxu0
        %v449 = vadd.f32 %v395, %v448
        %450 = vmatmul.f32.gmra.mxu0 %v405
        %v451 = vpop.f32.mrf.mxu0
        %v452 = vadd.f32 %v395, %v451
        %453 = vmatmul.f32.gmra.mxu0 %v408
        %v454 = vpop.f32.mrf.mxu0
        %v455 = vadd.f32 %v395, %v454
        %456 = vmatmul.f32.gmra.mxu0 %v411
        %v457 = vpop.f32.mrf.mxu0
        %v458 = vadd.f32 %v395, %v457
        %459 = vmatmul.f32.gmra.mxu0 %v414
        %v460 = vpop.f32.mrf.mxu0
        %v461 = vadd.f32 %v395, %v460
        %462 = vmatmul.f32.gmra.mxu0 %v417
        %v463 = vpop.f32.mrf.mxu0
        %v464 = vadd.f32 %v395, %v463
        %465 = vmatmul.f32.gmra.mxu0 %v420
        %v466 = vpop.f32.mrf.mxu0
        %v467 = vadd.f32 %v395, %v466
        %468 = vmatmul.f32.gmra.mxu0 %v423
        %v469 = vpop.f32.mrf.mxu0
        %v470 = vadd.f32 %v395, %v469
        %471 = vmatmul.f32.gmra.mxu0 %v426
        %v472 = vpop.f32.mrf.mxu0
        %v473 = vadd.f32 %v395, %v472
        %474 = vdwg.mxu0
        %v475 = vmax.f32 %v446, 0.0
        %v476 = vmax.f32 %v449, 0.0
        %v477 = vmax.f32 %v452, 0.0
        %v478 = vmax.f32 %v455, 0.0
        %v479 = vmax.f32 %v458, 0.0
        %v480 = vmax.f32 %v461, 0.0
        %v481 = vmax.f32 %v464, 0.0
        %v482 = vmax.f32 %v467, 0.0
        %v483 = vmax.f32 %v470, 0.0
        %v484 = vmax.f32 %v473, 0.0
        %v486 = vperm.slane %v365, 0
        %vm488 = vcmask 523264
        %v490 = vsel %vm488, %v475, 0
        %v493 = vsel %vm488, %v476, 0
        %v496 = vsel %vm488, %v477, 0
        %v499 = vsel %vm488, %v478, 0
        %v502 = vsel %vm488, %v479, 0
        %v505 = vsel %vm488, %v480, 0
        %v508 = vsel %vm488, %v481, 0
        %v511 = vsel %vm488, %v482, 0
        %v514 = vsel %vm488, %v483, 0
        %v517 = vsel %vm488, %v484, 0
        %519 = vmatpush.msra.mxu0 0.0
        %520 = vmatpush.msra.mxu0 0.0
        %521 = vmatpush.msra.mxu0 0.0
        %522 = vmatpush.msra.mxu0 0.0
        %523 = vmatpush.msra.mxu0 0.0
        %524 = vmatpush.msra.mxu0 0.0
        %525 = vmatpush.msra.mxu0 0.0
        %526 = vmatpush.msra.mxu0 0.0
        %527 = vmatpush.msra.mxu0 %v364
        %528 = vmatpush.msra.mxu0 %v363
        %529 = vmatpush.msra.mxu0 %v362
        %530 = vmatpush.msra.mxu0 %v361
        %531 = vmatpush.msra.mxu0 %v360
        %532 = vmatpush.msra.mxu0 %v359
        %533 = vmatpush.msra.mxu0 %v358
        %534 = vmatpush.msra.mxu0 %v357
        %535 = vmatmul.f32.gmra.mxu0 %v490
        %v536 = vpop.f32.mrf.mxu0
        %v537 = vadd.f32 %v486, %v536
        %538 = vmatmul.f32.gmra.mxu0 %v493
        %v539 = vpop.f32.mrf.mxu0
        %v540 = vadd.f32 %v486, %v539
        %541 = vmatmul.f32.gmra.mxu0 %v496
        %v542 = vpop.f32.mrf.mxu0
        %v543 = vadd.f32 %v486, %v542
        %544 = vmatmul.f32.gmra.mxu0 %v499
        %v545 = vpop.f32.mrf.mxu0
        %v546 = vadd.f32 %v486, %v545
        %547 = vmatmul.f32.gmra.mxu0 %v502
        %v548 = vpop.f32.mrf.mxu0
        %v549 = vadd.f32 %v486, %v548
        %550 = vmatmul.f32.gmra.mxu0 %v505
        %v551 = vpop.f32.mrf.mxu0
        %v552 = vadd.f32 %v486, %v551
        %553 = vmatmul.f32.gmra.mxu0 %v508
        %v554 = vpop.f32.mrf.mxu0
        %v555 = vadd.f32 %v486, %v554
        %556 = vmatmul.f32.gmra.mxu0 %v511
        %v557 = vpop.f32.mrf.mxu0
        %v558 = vadd.f32 %v486, %v557
        %559 = vmatmul.f32.gmra.mxu0 %v514
        %v560 = vpop.f32.mrf.mxu0
        %v561 = vadd.f32 %v486, %v560
        %562 = vmatmul.f32.gmra.mxu0 %v517
        %v563 = vpop.f32.mrf.mxu0
        %v564 = vadd.f32 %v486, %v563
        %565 = vdwg.mxu0
        %v566 = vmax.f32 %v537, 0.0
        %v567 = vmax.f32 %v540, 0.0
        %v568 = vmax.f32 %v543, 0.0
        %v569 = vmax.f32 %v546, 0.0
        %v570 = vmax.f32 %v549, 0.0
        %v571 = vmax.f32 %v552, 0.0
        %v572 = vmax.f32 %v555, 0.0
        %v573 = vmax.f32 %v558, 0.0
        %v574 = vmax.f32 %v561, 0.0
        %v575 = vmax.f32 %v564, 0.0
        %v577 = vperm.slane %v374, 0
        %v580 = vsel %vm488, %v566, 0
        %v583 = vsel %vm488, %v567, 0
        %v586 = vsel %vm488, %v568, 0
        %v589 = vsel %vm488, %v569, 0
        %v592 = vsel %vm488, %v570, 0
        %v595 = vsel %vm488, %v571, 0
        %v598 = vsel %vm488, %v572, 0
        %v601 = vsel %vm488, %v573, 0
        %v604 = vsel %vm488, %v574, 0
        %v607 = vsel %vm488, %v575, 0
        %609 = vmatpush.msra.mxu0 0.0
        %610 = vmatpush.msra.mxu0 0.0
        %611 = vmatpush.msra.mxu0 0.0
        %612 = vmatpush.msra.mxu0 0.0
        %613 = vmatpush.msra.mxu0 0.0
        %614 = vmatpush.msra.mxu0 0.0
        %615 = vmatpush.msra.mxu0 0.0
        %616 = vmatpush.msra.mxu0 0.0
        %617 = vmatpush.msra.mxu0 %v373
        %618 = vmatpush.msra.mxu0 %v372
        %619 = vmatpush.msra.mxu0 %v371
        %620 = vmatpush.msra.mxu0 %v370
        %621 = vmatpush.msra.mxu0 %v369
        %622 = vmatpush.msra.mxu0 %v368
        %623 = vmatpush.msra.mxu0 %v367
        %624 = vmatpush.msra.mxu0 %v366
        %625 = vmatmul.f32.gmra.mxu0 %v580
        %v626 = vpop.f32.mrf.mxu0
        %v627 = vadd.f32 %v577, %v626
        %628 = vmatmul.f32.gmra.mxu0 %v583
        %v629 = vpop.f32.mrf.mxu0
        %v630 = vadd.f32 %v577, %v629
        %631 = vmatmul.f32.gmra.mxu0 %v586
        %v632 = vpop.f32.mrf.mxu0
        %v633 = vadd.f32 %v577, %v632
        %634 = vmatmul.f32.gmra.mxu0 %v589
        %v635 = vpop.f32.mrf.mxu0
        %v636 = vadd.f32 %v577, %v635
        %637 = vmatmul.f32.gmra.mxu0 %v592
        %v638 = vpop.f32.mrf.mxu0
        %v639 = vadd.f32 %v577, %v638
        %640 = vmatmul.f32.gmra.mxu0 %v595
        %v641 = vpop.f32.mrf.mxu0
        %v642 = vadd.f32 %v577, %v641
        %643 = vmatmul.f32.gmra.mxu0 %v598
        %v644 = vpop.f32.mrf.mxu0
        %v645 = vadd.f32 %v577, %v644
        %646 = vmatmul.f32.gmra.mxu0 %v601
        %v647 = vpop.f32.mrf.mxu0
        %v648 = vadd.f32 %v577, %v647
        %649 = vmatmul.f32.gmra.mxu0 %v604
        %v650 = vpop.f32.mrf.mxu0
        %v651 = vadd.f32 %v577, %v650
        %652 = vmatmul.f32.gmra.mxu0 %v607
        %v653 = vpop.f32.mrf.mxu0
        %v654 = vadd.f32 %v577, %v653
        %655 = vdwg.mxu0
        %v656 = vmax.f32 %v627, 0.0
        %v657 = vmax.f32 %v630, 0.0
        %v658 = vmax.f32 %v633, 0.0
        %v659 = vmax.f32 %v636, 0.0
        %v660 = vmax.f32 %v639, 0.0
        %v661 = vmax.f32 %v642, 0.0
        %v662 = vmax.f32 %v645, 0.0
        %v663 = vmax.f32 %v648, 0.0
        %v664 = vmax.f32 %v651, 0.0
        %v665 = vmax.f32 %v654, 0.0
        %v667 = vperm.slane %v383, 0
        %v670 = vsel %vm488, %v656, 0
        %v673 = vsel %vm488, %v657, 0
        %v676 = vsel %vm488, %v658, 0
        %v679 = vsel %vm488, %v659, 0
        %v682 = vsel %vm488, %v660, 0
        %v685 = vsel %vm488, %v661, 0
        %v688 = vsel %vm488, %v662, 0
        %v691 = vsel %vm488, %v663, 0
        %v694 = vsel %vm488, %v664, 0
        %v697 = vsel %vm488, %v665, 0
        %699 = vmatpush.msra.mxu0 0.0
        %700 = vmatpush.msra.mxu0 0.0
        %701 = vmatpush.msra.mxu0 0.0
        %702 = vmatpush.msra.mxu0 0.0
        %703 = vmatpush.msra.mxu0 0.0
        %704 = vmatpush.msra.mxu0 0.0
        %705 = vmatpush.msra.mxu0 0.0
        %706 = vmatpush.msra.mxu0 0.0
        %707 = vmatpush.msra.mxu0 %v382
        %708 = vmatpush.msra.mxu0 %v381
        %709 = vmatpush.msra.mxu0 %v380
        %710 = vmatpush.msra.mxu0 %v379
        %711 = vmatpush.msra.mxu0 %v378
        %712 = vmatpush.msra.mxu0 %v377
        %713 = vmatpush.msra.mxu0 %v376
        %714 = vmatpush.msra.mxu0 %v375
        %715 = vmatmul.f32.gmra.mxu0 %v670
        %v716 = vpop.f32.mrf.mxu0
        %v717 = vadd.f32 %v667, %v716
        %718 = vmatmul.f32.gmra.mxu0 %v673
        %v719 = vpop.f32.mrf.mxu0
        %v720 = vadd.f32 %v667, %v719
        %721 = vmatmul.f32.gmra.mxu0 %v676
        %v722 = vpop.f32.mrf.mxu0
        %v723 = vadd.f32 %v667, %v722
        %724 = vmatmul.f32.gmra.mxu0 %v679
        %v725 = vpop.f32.mrf.mxu0
        %v726 = vadd.f32 %v667, %v725
        %727 = vmatmul.f32.gmra.mxu0 %v682
        %v728 = vpop.f32.mrf.mxu0
        %v729 = vadd.f32 %v667, %v728
        %730 = vmatmul.f32.gmra.mxu0 %v685
        %v731 = vpop.f32.mrf.mxu0
        %v732 = vadd.f32 %v667, %v731
        %733 = vmatmul.f32.gmra.mxu0 %v688
        %v734 = vpop.f32.mrf.mxu0
        %v735 = vadd.f32 %v667, %v734
        %736 = vmatmul.f32.gmra.mxu0 %v691
        %v737 = vpop.f32.mrf.mxu0
        %v738 = vadd.f32 %v667, %v737
        %739 = vmatmul.f32.gmra.mxu0 %v694
        %v740 = vpop.f32.mrf.mxu0
        %v741 = vadd.f32 %v667, %v740
        %742 = vmatmul.f32.gmra.mxu0 %v697
        %v743 = vpop.f32.mrf.mxu0
        %v744 = vadd.f32 %v667, %v743
        %745 = vdwg.mxu0
        %vm746 = vcmask 31744
        %747 = vst.msk [vmem:[%s334] sm:$0xff] %vm746, %v717
        %748 = vst.msk [vmem:[%s334 + $0x8] sm:$0xff] %vm746, %v720
        %749 = vst.msk [vmem:[%s334 + $0x10] sm:$0xff] %vm746, %v723
        %750 = vst.msk [vmem:[%s334 + $0x18] sm:$0xff] %vm746, %v726
        %751 = vst.msk [vmem:[%s334 + $0x20] sm:$0xff] %vm746, %v729
        %752 = vst.msk [vmem:[%s334 + $0x28] sm:$0xff] %vm746, %v732
        %753 = vst.msk [vmem:[%s334 + $0x30] sm:$0xff] %vm746, %v735
        %754 = vst.msk [vmem:[%s334 + $0x38] sm:$0xff] %vm746, %v738
        %755 = vst.msk [vmem:[%s334 + $0x40] sm:$0xff] %vm746, %v741
        %756 = vst.msk [vmem:[%s334 + $0x48] sm:$0xff] %vm746, %v744
        %s757 = sand.u32 %s222, 1
        %s758 = sand.u32 %s222, 1
        %s759 = smul.addr %s758, 80
        %s760 = scalar_lea.vmem [#allocation2], %s759
        // Predicated region
        $region57: #{tpu_custom_call.1} parent=55 // pred_check
          %p761 = pneg %p232
        $region58: #{tpu_custom_call.1} parent=55 // pred_check_branch
          %763 = sbr.rel (%p761) target = $region60
        $region59: #{tpu_custom_call.1} parent=55 // pred_region
          %s764 = smul.u32 10, %s20
          %s765 = ssub.s32 38, %s764
          %p766 = scmp.lt.s32.totalorder %s765, 10
          %s767 = scalar_select %p766, %s765, 10
          %s768 = smul.u32 8, %s767
          %p769 = scmp.ne.s32.totalorder 0, %s768
          %s770 = smul.addr %s764, 8
          %s771 = scalar_lea.vmem %s9, %s770
          // Predicated region
          $region61: #{tpu_custom_call.1} parent=59 // pred_check
            %p772 = pneg %p769
          $region62: #{tpu_custom_call.1} parent=59 // pred_check_branch
            %774 = sbr.rel (%p772) target = $region64
          $region63: #{tpu_custom_call.1} parent=59 // pred_region
            // Predicated region
            $region65: #{tpu_custom_call.1} parent=63 // pred_check
              _
            $region66: #{tpu_custom_call.1} parent=63 // pred_check_branch
              %776 = sbr.rel (0) target = $region68
            $region67: #{tpu_custom_call.1} parent=63 // pred_region
              // Predicated region
              $region87: #{tpu_custom_call.1} parent=67 // pred_check
                _
              $region88: #{tpu_custom_call.1} parent=67 // pred_check_branch
                %845 = sbr.rel (0) target = $region90
              $region89: #{tpu_custom_call.1} parent=67 // pred_region
                %s846 = sdiv.u32.pop %s767, 10
                %s847 = srem.u32.pop %s767, 10
                // While loop
                $region91: #{tpu_custom_call.1} parent=89 // loop_pre_header
                  _
                $region92: #{tpu_custom_call.1} parent=89 // loop_header
                  %s849 = sphi 0, %s851
                  %p850 = scmp.ge.s32.totalorder %s849, %s846
                  %s854 = sphi 0, %s879
                  %s855 = sphi %s760, %s882
                  %s856 = sphi %s771, %s883
                $region93: #{tpu_custom_call.1} parent=89 // loop_header_branch
                  %853 = sbr.rel (%p850) target = $region97
                $region94: #{tpu_custom_call.1} parent=89 // loop_body
                  %v857 = vld [vmem:[%s855] sm:$0xff]
                  %858 = vst [vmem:[%s856] sm:$0xff] %v857
                  %v859 = vld [vmem:[%s855 + $0x8] sm:$0xff]
                  %860 = vst [vmem:[%s856 + $0x8] sm:$0xff] %v859
                  %v861 = vld [vmem:[%s855 + $0x10] sm:$0xff]
                  %862 = vst [vmem:[%s856 + $0x10] sm:$0xff] %v861
                  %v863 = vld [vmem:[%s855 + $0x18] sm:$0xff]
                  %864 = vst [vmem:[%s856 + $0x18] sm:$0xff] %v863
                  %v865 = vld [vmem:[%s855 + $0x20] sm:$0xff]
                  %866 = vst [vmem:[%s856 + $0x20] sm:$0xff] %v865
                  %v867 = vld [vmem:[%s855 + $0x28] sm:$0xff]
                  %868 = vst [vmem:[%s856 + $0x28] sm:$0xff] %v867
                  %v869 = vld [vmem:[%s855 + $0x30] sm:$0xff]
                  %870 = vst [vmem:[%s856 + $0x30] sm:$0xff] %v869
                  %v871 = vld [vmem:[%s855 + $0x38] sm:$0xff]
                  %872 = vst [vmem:[%s856 + $0x38] sm:$0xff] %v871
                  %v873 = vld [vmem:[%s855 + $0x40] sm:$0xff]
                  %874 = vst [vmem:[%s856 + $0x40] sm:$0xff] %v873
                  %v875 = vld [vmem:[%s855 + $0x48] sm:$0xff]
                  %876 = vst [vmem:[%s856 + $0x48] sm:$0xff] %v875
                  %s877 = sadd.s32 1, %s854
                  %p878 = scmp.ge.s32.totalorder %s877, %s846
                  %s879 = scalar_select %p878, 0, %s877
                  %s880 = smul.u32 %s879, 80
                  %s881 = smul.u32 %s879, 80
                  %s882 = scalar_lea.vmem %s760, %s880 [#allocation2]
                  %s883 = scalar_lea.vmem %s771, %s881
                $region95: #{tpu_custom_call.1} parent=89 // loop_footer
                  %s851 = sadd.s32 %s849, 1
                $region96: #{tpu_custom_call.1} parent=89 // loop_footer_branch
                  %848 = sbr.rel target = $region92
                $region97: #{tpu_custom_call.1} parent=89 // loop_exit
                  _
                %s884 = sdiv.u32.pop %s767, 10
                %s885 = srem.u32.pop %s767, 10
                %s886 = smul.u32 %s884, 10
                %s887 = smul.u32 8, %s886
                %s888 = scalar_lea.vmem %s760, %s887 [#allocation2]
                %s889 = smul.u32 8, %s886
                %s890 = scalar_lea.vmem %s771, %s889
                // While loop
                $region98: #{tpu_custom_call.1} parent=89 // loop_pre_header
                  _
                $region99: #{tpu_custom_call.1} parent=89 // loop_header
                  %s892 = sphi 0, %s894
                  %p893 = scmp.ge.s32.totalorder %s892, %s885
                  %s897 = sphi 0, %s904
                  %s898 = sphi %s888, %s907
                  %s899 = sphi %s890, %s908
                $region100: #{tpu_custom_call.1} parent=89 // loop_header_branch
                  %896 = sbr.rel (%p893) target = $region104
                $region101: #{tpu_custom_call.1} parent=89 // loop_body
                  %v900 = vld [vmem:[%s898] sm:$0xff]
                  %901 = vst [vmem:[%s899] sm:$0xff] %v900
                  %s902 = sadd.s32 1, %s897
                  %p903 = scmp.ge.s32.totalorder %s902, %s885
                  %s904 = scalar_select %p903, 0, %s902
                  %s905 = smul.u32 %s904, 8
                  %s906 = smul.u32 %s904, 8
                  %s907 = scalar_lea.vmem %s888, %s905 [#allocation2]
                  %s908 = scalar_lea.vmem %s890, %s906
                $region102: #{tpu_custom_call.1} parent=89 // loop_footer
                  %s894 = sadd.s32 %s892, 1
                $region103: #{tpu_custom_call.1} parent=89 // loop_footer_branch
                  %891 = sbr.rel target = $region99
                $region104: #{tpu_custom_call.1} parent=89 // loop_exit
                  _
              $region90: #{tpu_custom_call.1} parent=67 // pred_fallthru
                _
              // Predicated region
              $region105: #{tpu_custom_call.1} parent=67 // pred_check
                _
              $region106: #{tpu_custom_call.1} parent=67 // pred_check_branch
                %910 = sbr.rel target = $region108
              $region107: #{tpu_custom_call.1} parent=67 // pred_region
                _
              $region108: #{tpu_custom_call.1} parent=67 // pred_fallthru
                _
            $region68: #{tpu_custom_call.1} parent=63 // pred_fallthru
              _
            // Predicated region
            $region69: #{tpu_custom_call.1} parent=63 // pred_check
              _
            $region70: #{tpu_custom_call.1} parent=63 // pred_check_branch
              %778 = sbr.rel target = $region72
            $region71: #{tpu_custom_call.1} parent=63 // pred_region
              %s780 = ssub.s32 256, 1
              %s781 = sdiv.u32.pop %s767, 10
              %s782 = srem.u32.pop %s767, 10
              // While loop
              $region73: #{tpu_custom_call.1} parent=71 // loop_pre_header
                _
              $region74: #{tpu_custom_call.1} parent=71 // loop_header
                %s784 = sphi 0, %s786
                %p785 = scmp.ge.s32.totalorder %s784, %s781
                %s789 = sphi 0, %s814
                %s790 = sphi %s760, %s817
                %s791 = sphi %s771, %s818
              $region75: #{tpu_custom_call.1} parent=71 // loop_header_branch
                %788 = sbr.rel (%p785) target = $region79
              $region76: #{tpu_custom_call.1} parent=71 // loop_body
                %v792 = vld [vmem:[%s790] sm:%s780]
                %793 = vst [vmem:[%s791] sm:%s780] %v792
                %v794 = vld [vmem:[%s790 + $0x8] sm:%s780]
                %795 = vst [vmem:[%s791 + $0x8] sm:%s780] %v794
                %v796 = vld [vmem:[%s790 + $0x10] sm:%s780]
                %797 = vst [vmem:[%s791 + $0x10] sm:%s780] %v796
                %v798 = vld [vmem:[%s790 + $0x18] sm:%s780]
                %799 = vst [vmem:[%s791 + $0x18] sm:%s780] %v798
                %v800 = vld [vmem:[%s790 + $0x20] sm:%s780]
                %801 = vst [vmem:[%s791 + $0x20] sm:%s780] %v800
                %v802 = vld [vmem:[%s790 + $0x28] sm:%s780]
                %803 = vst [vmem:[%s791 + $0x28] sm:%s780] %v802
                %v804 = vld [vmem:[%s790 + $0x30] sm:%s780]
                %805 = vst [vmem:[%s791 + $0x30] sm:%s780] %v804
                %v806 = vld [vmem:[%s790 + $0x38] sm:%s780]
                %807 = vst [vmem:[%s791 + $0x38] sm:%s780] %v806
                %v808 = vld [vmem:[%s790 + $0x40] sm:%s780]
                %809 = vst [vmem:[%s791 + $0x40] sm:%s780] %v808
                %v810 = vld [vmem:[%s790 + $0x48] sm:%s780]
                %811 = vst [vmem:[%s791 + $0x48] sm:%s780] %v810
                %s812 = sadd.s32 1, %s789
                %p813 = scmp.ge.s32.totalorder %s812, %s781
                %s814 = scalar_select %p813, 0, %s812
                %s815 = smul.u32 %s814, 80
                %s816 = smul.u32 %s814, 80
                %s817 = scalar_lea.vmem %s760, %s815 [#allocation2]
                %s818 = scalar_lea.vmem %s771, %s816
              $region77: #{tpu_custom_call.1} parent=71 // loop_footer
                %s786 = sadd.s32 %s784, 1
              $region78: #{tpu_custom_call.1} parent=71 // loop_footer_branch
                %783 = sbr.rel target = $region74
              $region79: #{tpu_custom_call.1} parent=71 // loop_exit
                _
              %s819 = sdiv.u32.pop %s767, 10
              %s820 = srem.u32.pop %s767, 10
              %s821 = smul.u32 %s819, 10
              %s822 = smul.u32 8, %s821
              %s823 = scalar_lea.vmem %s760, %s822 [#allocation2]
              %s824 = smul.u32 8, %s821
              %s825 = scalar_lea.vmem %s771, %s824
              // While loop
              $region80: #{tpu_custom_call.1} parent=71 // loop_pre_header
                _
              $region81: #{tpu_custom_call.1} parent=71 // loop_header
                %s827 = sphi 0, %s829
                %p828 = scmp.ge.s32.totalorder %s827, %s820
                %s832 = sphi 0, %s839
                %s833 = sphi %s823, %s842
                %s834 = sphi %s825, %s843
              $region82: #{tpu_custom_call.1} parent=71 // loop_header_branch
                %831 = sbr.rel (%p828) target = $region86
              $region83: #{tpu_custom_call.1} parent=71 // loop_body
                %v835 = vld [vmem:[%s833] sm:%s780]
                %836 = vst [vmem:[%s834] sm:%s780] %v835
                %s837 = sadd.s32 1, %s832
                %p838 = scmp.ge.s32.totalorder %s837, %s820
                %s839 = scalar_select %p838, 0, %s837
                %s840 = smul.u32 %s839, 8
                %s841 = smul.u32 %s839, 8
                %s842 = scalar_lea.vmem %s823, %s840 [#allocation2]
                %s843 = scalar_lea.vmem %s825, %s841
              $region84: #{tpu_custom_call.1} parent=71 // loop_footer
                %s829 = sadd.s32 %s827, 1
              $region85: #{tpu_custom_call.1} parent=71 // loop_footer_branch
                %826 = sbr.rel target = $region81
              $region86: #{tpu_custom_call.1} parent=71 // loop_exit
                _
            $region72: #{tpu_custom_call.1} parent=63 // pred_fallthru
              _
          $region64: #{tpu_custom_call.1} parent=59 // pred_fallthru
            _
          %911 = vnop
        $region60: #{tpu_custom_call.1} parent=55 // pred_fallthru
          _
      $region56: #{tpu_custom_call.1} parent=5 // pred_fallthru
        _
      %p912 = scmp.le.s32.totalorder 2, %s15
      // Predicated region
      $region109: #{tpu_custom_call.1} parent=5 // pred_check
        %p913 = pneg %p912
      $region110: #{tpu_custom_call.1} parent=5 // pred_check_branch
        %915 = sbr.rel (%p913) target = $region112
      $region111: #{tpu_custom_call.1} parent=5 // pred_region
        %s916 = ssub.s32 %s15, 2
        // Predicated region
        $region113: #{tpu_custom_call.1} parent=111 // pred_check
          %p917 = pneg %p238
        $region114: #{tpu_custom_call.1} parent=111 // pred_check_branch
          %919 = sbr.rel (%p917) target = $region116
        $region115: #{tpu_custom_call.1} parent=111 // pred_region
          %s920 = sand.u32 %s223, 1
          %s921 = sand.u32 %s223, 1
          %s922 = smul.addr %s921, 80
          %s923 = scalar_lea.vmem [#allocation2], %s922
        $region116: #{tpu_custom_call.1} parent=111 // pred_fallthru
          _
      $region112: #{tpu_custom_call.1} parent=5 // pred_fallthru
        _
    $region6: #{tpu_custom_call.1} parent=1 // loop_footer
      %s19 = sadd.s32 1, %s15
    $region7: #{tpu_custom_call.1} parent=1 // loop_footer_branch
      %14 = sbr.rel target = $region3
    $region8: #{tpu_custom_call.1} parent=1 // loop_exit
      _

</llo_original>
